<compile_context>
chip_gen: v7x
topology: tpu7x:2x2x1
jax: 0.10.0
libtpu: 0.0.40
codegen_flags: <defaults>
</compile_context>

<pallas_src>
import numpy as np

import jax
import jax.numpy as jnp
from jax.experimental import pallas as pl
from jax.experimental.pallas import tpu as pltpu


def _expert_kernel(eid_ref, x_ref, w1t_ref, b1_ref, w2t_ref, b2_ref, o_ref):
    # eid_ref (SMEM scalar-prefetch) is consumed by the BlockSpec index_maps.
    del eid_ref
    x = x_ref[...].astype(jnp.bfloat16)                       # (tm, d_model) bf16
    h = jnp.dot(x, w1t_ref[0], preferred_element_type=jnp.float32)
    h = h + b1_ref[0]                                         # (tm, d_hidden) f32
    # Activation: tanh-approximate GELU (EUP transcendental, overlaps MXU work).
    # TODO(synk): swap to exact erf GELU if bit-matching torch.nn.GELU() is required.
    h = jax.nn.gelu(h, approximate=True)
    y = jnp.dot(h.astype(jnp.bfloat16), w2t_ref[0],
                preferred_element_type=jnp.float32)
    y = y + b2_ref[0]                                         # (tm, d_model) f32
    o_ref[...] = y.astype(o_ref.dtype)


def expert_forward(inp, fwd_expert_count, w1, b1, w2, b2, *, tm=128):
    """Grouped MoE expert FFN forward.

    inp:  (N, d_model)                      tokens grouped contiguously by expert
    fwd_expert_count: (num_expert,) int     tokens per expert (host-side, like FastMoE)
    w1:   (num_expert, d_hidden, d_model)   FMoELinear htoh4 weight
    b1:   (num_expert, d_hidden)
    w2:   (num_expert, d_model, d_hidden)   FMoELinear h4toh weight
    b2:   (num_expert, d_model)
    """
    N, d_model = inp.shape
    num_expert, d_hidden, _ = w1.shape
    out_dtype = inp.dtype

    # FastMoE keeps the expert counts on CPU; treat them as host values here too.
    counts = np.asarray(jax.device_get(fwd_expert_count), dtype=np.int64)
    if counts.shape != (num_expert,) or int(counts.sum()) != N:
        raise ValueError("fwd_expert_count must have one entry per expert and sum to N")
    if N == 0:
        return jnp.zeros((0, d_model), dtype=out_dtype)

    # ---- host-side grouped/padded layout: each expert rounded up to tm rows ----
    caps = ((counts + tm - 1) // tm) * tm
    orig_starts = np.concatenate(([0], np.cumsum(counts)))[:-1]
    pad_starts = np.concatenate(([0], np.cumsum(caps)))[:-1]
    n_pad = int(caps.sum())
    num_tiles = n_pad // tm

    gather_idx = np.zeros((n_pad,), dtype=np.int32)    # padded row -> source row
    inv_idx = np.zeros((N,), dtype=np.int32)           # source row -> padded row
    tile_eid = np.zeros((num_tiles,), dtype=np.int32)  # grid step -> expert id
    for e in range(num_expert):
        c, ps, os_ = int(counts[e]), int(pad_starts[e]), int(orig_starts[e])
        gather_idx[ps:ps + c] = np.arange(os_, os_ + c, dtype=np.int32)
        inv_idx[os_:os_ + c] = np.arange(ps, ps + c, dtype=np.int32)
        tile_eid[ps // tm:(ps + int(caps[e])) // tm] = e

    # ---- glue: padded bf16 activations, pre-transposed bf16 expert weights ----
    x_pad = jnp.take(inp, jnp.asarray(gather_idx), axis=0).astype(jnp.bfloat16)
    w1t = jnp.transpose(w1, (0, 2, 1)).astype(jnp.bfloat16)   # (E, d_model, d_hidden)
    w2t = jnp.transpose(w2, (0, 2, 1)).astype(jnp.bfloat16)   # (E, d_hidden, d_model)
    b1r = b1.reshape(num_expert, 1, d_hidden).astype(jnp.float32)
    b2r = b2.reshape(num_expert, 1, d_model).astype(jnp.float32)

    # VMEM budget: double-buffered per-step blocks plus headroom (capped below
    # v7x's 64 MiB physical VMEM).
    block_bytes = (tm * d_model * 2                                  # x tile (bf16)
                   + tm * d_model * np.dtype(out_dtype).itemsize     # out tile
                   + d_model * d_hidden * 2 + d_hidden * 4           # W1^T + b1
                   + d_hidden * d_model * 2 + d_model * 4)           # W2^T + b2
    vmem_limit = int(min(max(4 * block_bytes, 32 << 20), 48 << 20))
    # TODO(synk): for very large d_hidden, add a grid axis over d_hidden and a
    # VMEM f32 accumulator (pl.when init/finalize) so double-buffered weight
    # tiles stay under v7x's 64 MiB VMEM.

    out_pad = pl.pallas_call(
        _expert_kernel,
        out_shape=jax.ShapeDtypeStruct((n_pad, d_model), out_dtype),
        grid_spec=pltpu.PrefetchScalarGridSpec(
            num_scalar_prefetch=1,
            grid=(num_tiles,),
            in_specs=[
                pl.BlockSpec((tm, d_model), lambda i, eid: (i, 0)),                   # x
                pl.BlockSpec((1, d_model, d_hidden), lambda i, eid: (eid[i], 0, 0)),  # W1^T
                pl.BlockSpec((1, 1, d_hidden), lambda i, eid: (eid[i], 0, 0)),        # b1
                pl.BlockSpec((1, d_hidden, d_model), lambda i, eid: (eid[i], 0, 0)),  # W2^T
                pl.BlockSpec((1, 1, d_model), lambda i, eid: (eid[i], 0, 0)),         # b2
            ],
            out_specs=pl.BlockSpec((tm, d_model), lambda i, eid: (i, 0)),
        ),
        compiler_params=pltpu.CompilerParams(
            dimension_semantics=("parallel",),
            vmem_limit_bytes=vmem_limit),
    )(jnp.asarray(tile_eid), x_pad, w1t, b1r, w2t, b2r)

    # Un-pad back to the original grouped token order (pure glue).
    return jnp.take(out_pad, jnp.asarray(inv_idx), axis=0)


def expert_reference(inp, fwd_expert_count, w1, b1, w2, b2):
    """Pure-JAX reference with matching bf16 matmul operands / f32 accumulation."""
    N = inp.shape[0]
    num_expert = w1.shape[0]
    eid = jnp.repeat(jnp.arange(num_expert, dtype=jnp.int32),
                     fwd_expert_count, total_repeat_length=N)       # (N,)
    x = inp.astype(jnp.bfloat16)
    h = jnp.einsum("nd,nhd->nh", x, w1.astype(jnp.bfloat16)[eid],
                   preferred_element_type=jnp.float32) + b1[eid]
    h = jax.nn.gelu(h, approximate=True)
    y = jnp.einsum("nh,nmh->nm", h.astype(jnp.bfloat16), w2.astype(jnp.bfloat16)[eid],
                   preferred_element_type=jnp.float32) + b2[eid]
    return y.astype(inp.dtype)


if __name__ == "__main__":
    num_expert = 4
    d_model = 128          # lane-aligned (multiple of 128)
    d_hidden = 256
    N = 128                # total tokens routed to this worker

    key = jax.random.PRNGKey(0)
    k_x, k_w1, k_b1, k_w2, k_b2 = jax.random.split(key, 5)

    inp = jax.random.normal(k_x, (N, d_model), dtype=jnp.float32)
    # FMoELinear weight shapes: (num_expert, out_features, in_features).
    w1 = jax.random.normal(k_w1, (num_expert, d_hidden, d_model),
                           dtype=jnp.float32) * (1.0 / jnp.sqrt(d_model))
    b1 = jax.random.normal(k_b1, (num_expert, d_hidden), dtype=jnp.float32) * 0.1
    w2 = jax.random.normal(k_w2, (num_expert, d_model, d_hidden),
                           dtype=jnp.float32) * (1.0 / jnp.sqrt(d_hidden))
    b2 = jax.random.normal(k_b2, (num_expert, d_model), dtype=jnp.float32) * 0.1

    # Tokens per expert (grouped layout), sums to N.
    fwd_expert_count = jnp.array([40, 24, 36, 28], dtype=jnp.int32)

    out = expert_forward(inp, fwd_expert_count, w1, b1, w2, b2, tm=128)
    out = jax.block_until_ready(out)

    ref = expert_reference(inp, fwd_expert_count, w1, b1, w2, b2)
    assert out.shape == (N, d_model)
    assert jnp.allclose(out, ref, atol=1e-2, rtol=1e-2), "mismatch vs reference"

    print("KERNEL_OK")
</pallas_src>

<mosaic_0001>
module attributes {stable_mosaic.version = 11 : i64} {
  func.func @_expert_kernel(%arg0: i32, %arg1: memref<4xi32, #tpu.memory_space<smem>>, %arg2: memref<128x128xbf16, #tpu.memory_space<vmem>>, %arg3: memref<1x128x256xbf16, #tpu.memory_space<vmem>>, %arg4: memref<1x1x256xf32, #tpu.memory_space<vmem>>, %arg5: memref<1x256x128xbf16, #tpu.memory_space<vmem>>, %arg6: memref<1x1x128xf32, #tpu.memory_space<vmem>>, %arg7: memref<128x128xf32, #tpu.memory_space<vmem>>) attributes {dimension_semantics = [#tpu.dimension_semantics<parallel>], iteration_bounds = array<i64: 4>, scalar_prefetch = 1 : i64, scratch_operands = 0 : i64, tpu.core_type = #tpu.core_type<tc>, window_params = [{transform_indices = @transform_0, window_bounds = array<i64: 128, 128>}, {transform_indices = @transform_1, window_bounds = array<i64: 1, 128, 256>}, {transform_indices = @transform_2, window_bounds = array<i64: 1, 1, 256>}, {transform_indices = @transform_3, window_bounds = array<i64: 1, 256, 128>}, {transform_indices = @transform_4, window_bounds = array<i64: 1, 1, 128>}, {transform_indices = @transform_5, window_bounds = array<i64: 128, 128>}]} {
    %c0 = arith.constant 0 : index
    %c0_0 = arith.constant 0 : index
    %0 = vector.load %arg2[%c0, %c0_0] : memref<128x128xbf16, #tpu.memory_space<vmem>>, vector<128x128xbf16>
    %c0_1 = arith.constant 0 : index
    %c0_2 = arith.constant 0 : index
    %c0_3 = arith.constant 0 : index
    %1 = vector.load %arg3[%c0_1, %c0_2, %c0_3] : memref<1x128x256xbf16, #tpu.memory_space<vmem>>, vector<1x128x256xbf16>
    %2 = vector.shape_cast %1 : vector<1x128x256xbf16> to vector<128x256xbf16>
    %cst = arith.constant dense<0.000000e+00> : vector<128x256xf32>
    %3 = tpu.matmul %0, %2, %cst {dimension_numbers = #tpu.dot_dimension_numbers<[1], [0], [0], [1], [0, 0, 1, 1], [], []>} : vector<128x128xbf16>, vector<128x256xbf16>, vector<128x256xf32> -> vector<128x256xf32>
    %c0_4 = arith.constant 0 : index
    %c0_5 = arith.constant 0 : index
    %c0_6 = arith.constant 0 : index
    %4 = vector.load %arg4[%c0_4, %c0_5, %c0_6] : memref<1x1x256xf32, #tpu.memory_space<vmem>>, vector<1x1x256xf32>
    %5 = vector.shape_cast %4 : vector<1x1x256xf32> to vector<1x256xf32>
    %6 = vector.broadcast %5 : vector<1x256xf32> to vector<128x256xf32>
    %7 = arith.addf %3, %6 : vector<128x256xf32>
    %8 = arith.mulf %7, %7 : vector<128x256xf32>
    %9 = arith.mulf %7, %8 : vector<128x256xf32>
    %cst_7 = arith.constant 4.471500e-02 : f32
    %10 = vector.broadcast %cst_7 : f32 to vector<128x256xf32>
    %11 = arith.mulf %10, %9 : vector<128x256xf32>
    %12 = arith.addf %7, %11 : vector<128x256xf32>
    %cst_8 = arith.constant 0.797884583 : f32
    %13 = vector.broadcast %cst_8 : f32 to vector<128x256xf32>
    %14 = arith.mulf %13, %12 : vector<128x256xf32>
    %15 = math.tanh %14 : vector<128x256xf32>
    %cst_9 = arith.constant 1.000000e+00 : f32
    %16 = vector.broadcast %cst_9 : f32 to vector<128x256xf32>
    %17 = arith.addf %16, %15 : vector<128x256xf32>
    %cst_10 = arith.constant 5.000000e-01 : f32
    %18 = vector.broadcast %cst_10 : f32 to vector<128x256xf32>
    %19 = arith.mulf %18, %17 : vector<128x256xf32>
    %20 = arith.mulf %7, %19 : vector<128x256xf32>
    %21 = arith.truncf %20 : vector<128x256xf32> to vector<128x256xbf16>
    %c0_11 = arith.constant 0 : index
    %c0_12 = arith.constant 0 : index
    %c0_13 = arith.constant 0 : index
    %22 = vector.load %arg5[%c0_11, %c0_12, %c0_13] : memref<1x256x128xbf16, #tpu.memory_space<vmem>>, vector<1x256x128xbf16>
    %23 = vector.shape_cast %22 : vector<1x256x128xbf16> to vector<256x128xbf16>
    %cst_14 = arith.constant dense<0.000000e+00> : vector<128x128xf32>
    %24 = tpu.matmul %21, %23, %cst_14 {dimension_numbers = #tpu.dot_dimension_numbers<[1], [0], [0], [1], [0, 0, 1, 1], [], []>} : vector<128x256xbf16>, vector<256x128xbf16>, vector<128x128xf32> -> vector<128x128xf32>
    %c0_15 = arith.constant 0 : index
    %c0_16 = arith.constant 0 : index
    %c0_17 = arith.constant 0 : index
    %25 = vector.load %arg6[%c0_15, %c0_16, %c0_17] : memref<1x1x128xf32, #tpu.memory_space<vmem>>, vector<1x1x128xf32>
    %26 = vector.shape_cast %25 : vector<1x1x128xf32> to vector<1x128xf32>
    %27 = vector.broadcast %26 : vector<1x128xf32> to vector<128x128xf32>
    %28 = arith.addf %24, %27 : vector<128x128xf32>
    %c0_18 = arith.constant 0 : index
    %c0_19 = arith.constant 0 : index
    %29 = vector.load %arg7[%c0_18, %c0_19] : memref<128x128xf32, #tpu.memory_space<vmem>>, vector<128x128xf32>
    tpu.vector_store %arg7[%c0_18, %c0_19], %28 {strides = array<i32>} : memref<128x128xf32, #tpu.memory_space<vmem>>, vector<128x128xf32>,
    return
  }
  func.func @transform_0(%arg0: i32, %arg1: memref<4xi32, #tpu.memory_space<smem>>) -> (i32, i32) {
    %c0_i32 = arith.constant 0 : i32
    %c0_i32_0 = arith.constant 0 : i32
    return %arg0, %c0_i32 : i32, i32
  }
  func.func @transform_1(%arg0: i32, %arg1: memref<4xi32, #tpu.memory_space<smem>>) -> (i32, i32, i32) {
    %0 = arith.index_cast %arg0 : i32 to index
    %1 = memref.load %arg1[%0] : memref<4xi32, #tpu.memory_space<smem>>
    %c0_i32 = arith.constant 0 : i32
    %c0_i32_0 = arith.constant 0 : i32
    %c0_i32_1 = arith.constant 0 : i32
    return %1, %c0_i32, %c0_i32_0 : i32, i32, i32
  }
  func.func @transform_2(%arg0: i32, %arg1: memref<4xi32, #tpu.memory_space<smem>>) -> (i32, i32, i32) {
    %0 = arith.index_cast %arg0 : i32 to index
    %1 = memref.load %arg1[%0] : memref<4xi32, #tpu.memory_space<smem>>
    %c0_i32 = arith.constant 0 : i32
    %c0_i32_0 = arith.constant 0 : i32
    %c0_i32_1 = arith.constant 0 : i32
    return %1, %c0_i32, %c0_i32_0 : i32, i32, i32
  }
  func.func @transform_3(%arg0: i32, %arg1: memref<4xi32, #tpu.memory_space<smem>>) -> (i32, i32, i32) {
    %0 = arith.index_cast %arg0 : i32 to index
    %1 = memref.load %arg1[%0] : memref<4xi32, #tpu.memory_space<smem>>
    %c0_i32 = arith.constant 0 : i32
    %c0_i32_0 = arith.constant 0 : i32
    %c0_i32_1 = arith.constant 0 : i32
    return %1, %c0_i32, %c0_i32_0 : i32, i32, i32
  }
  func.func @transform_4(%arg0: i32, %arg1: memref<4xi32, #tpu.memory_space<smem>>) -> (i32, i32, i32) {
    %0 = arith.index_cast %arg0 : i32 to index
    %1 = memref.load %arg1[%0] : memref<4xi32, #tpu.memory_space<smem>>
    %c0_i32 = arith.constant 0 : i32
    %c0_i32_0 = arith.constant 0 : i32
    %c0_i32_1 = arith.constant 0 : i32
    return %1, %c0_i32, %c0_i32_0 : i32, i32, i32
  }
  func.func @transform_5(%arg0: i32, %arg1: memref<4xi32, #tpu.memory_space<smem>>) -> (i32, i32) {
    %c0_i32 = arith.constant 0 : i32
    %c0_i32_0 = arith.constant 0 : i32
    return %arg0, %c0_i32 : i32, i32
  }
}

</mosaic_0001>

<llo_original>
// kernel: tpu_custom_call.1
$region0: #{tpu_custom_call.1}
  #allocation0 [shape = 'u32[]', space=smem, size = 0x4, offset = 0x4, fixed_abs, tag = 'smem constant byte address 0x4 - core index']
  #allocation1 [shape = 'u32[144,128]{1,0:T(1,128)}', space=vmem, size = 0x12000, scoped, tag = 'internal scratch']
  #allocation2 [shape = 's32[1]{0}', space=sflag, size = 0x4, scoped, tag = 'scoped memory for tpu_custom_call.1']
  #allocation3 [shape = 'u8[512]{0}', space=smem, size = 0x200, scoped, tag = 'prefetched SMEM operand 0']
  %s0 = inlined_call_operand.hbm [shape: s32[4], index: 0, kind: input, shape index: {}]
  %s1 = inlined_call_operand.hbm [shape: bf16[512,128], index: 1, kind: input, shape index: {}]
  %s2 = inlined_call_operand.hbm [shape: bf16[4,128,256], index: 2, kind: input, shape index: {}]
  %s3 = inlined_call_operand.vmem [shape: f32[4,1,256], index: 3, kind: input, shape index: {}]
  %s4 = inlined_call_operand.hbm [shape: bf16[4,256,128], index: 4, kind: input, shape index: {}]
  %s5 = inlined_call_operand.vmem [shape: f32[4,1,128], index: 5, kind: input, shape index: {}]
  %s6 = inlined_call_operand.hbm [shape: f32[512,128], index: 6, kind: output, shape index: {}]
  %s7 = sld [smem:[#allocation0]]
  $region65: #{tpu_custom_call.1} parent=0
    _
  %s9 = ssub.s32 1, %s7
  %s10 = scalar_select 0, %s9, %s7
  %12 = dma.hbm_to_smem %s0, 16, [#allocation3], [#allocation2]
  %13 = dma.done [#allocation2], 16
  %14 = sfence
  $region1: #{tpu_custom_call.1} parent=0
    #allocation4 [shape = 'u8[65536]{0}', space=vmem, size = 0x10000, scoped, tag = 'input window, operand 1']
    #allocation5 [shape = 's32[2]{0}', space=sflag, size = 0x8, scoped, tag = 'scoped memory for tpu_custom_call.1']
    #allocation6 [shape = 's32[2]{0}', space=sflag, size = 0x8, scoped, tag = 'scoped memory for tpu_custom_call.1']
    #allocation7 [shape = 'u8[131072]{0}', space=vmem, size = 0x20000, scoped, tag = 'input window, operand 2']
    #allocation8 [shape = 's32[2]{0}', space=sflag, size = 0x8, scoped, tag = 'scoped memory for tpu_custom_call.1']
    #allocation9 [shape = 'u8[131072]{0}', space=vmem, size = 0x20000, scoped, tag = 'input window, operand 4']
    #allocation10 [shape = 'u8[131072]{0}', space=vmem, size = 0x20000, scoped, tag = 'output window, operand 0']
    %15 = vsyncpa [#allocation5], 0
    %s16 = scalar_lea.sflag [#allocation5], 1
    %17 = vsyncpa %s16, 0
    %18 = vsyncpa [#allocation8], 0
    %s19 = scalar_lea.sflag [#allocation8], 1
    %20 = vsyncpa %s19, 0
    %21 = vsyncpa [#allocation6], 0
    %s22 = scalar_lea.sflag [#allocation6], 1
    %23 = vsyncpa %s22, 0
    loop: start=0, step=1, limit=6
    $region2: #{tpu_custom_call.1} parent=1 // loop_pre_header
      _
    $region3: #{tpu_custom_call.1} parent=1 // loop_header
      %s25 = sphi 0, %s29
      %p26 = scmp.ge.s32.totalorder %s25, 6
      %s35 = sphi 0, %s37
      %s38 = sphi 0, %s35
      %s39 = sphi 0, %s38
      %s55 = sphi 0, %s39
      %s63 = sphi 0, %s65
      %s66 = sphi 0, %s63
      %s67 = sphi 0, %s66
      %s83 = sphi 0, %s67
      %s91 = sphi 0, %s93
      %s94 = sphi 0, %s91
      %s95 = sphi 0, %s94
      %s111 = sphi 0, %s95
      %s119 = sphi 0, %s121
      %s122 = sphi 0, %s119
      %s123 = sphi 0, %s122
      %s139 = sphi 0, %s123
      %s147 = sphi 0, %s149
      %s150 = sphi 0, %s147
      %s151 = sphi 0, %s150
      %s167 = sphi 0, %s151
      %s173 = sphi 0, %s175
      %s176 = sphi 0, %s173
      %s177 = sphi 0, %s176
      %s193 = sphi 0, %s177
    $region4: #{tpu_custom_call.1} parent=1 // loop_header_branch
      %28 = sbr.rel (%p26) target = $region8
    $region5: #{tpu_custom_call.1} parent=1 // loop_body
      %s30 = ssub.s32 %s25, 1
      %s31 = ssub.s32 %s25, 2
      %s32 = sadd.s32 %s25, 1
      %s33 = ssub.s32 %s25, %s32
      %p34 = scmp.eq.s32.totalorder %s33, 0
      %s36 = sadd.s32 %s35, 1
      %s37 = scalar_select %p34, %s35, %s36
      %p40 = pneg %p34
      %p41 = scmp.eq.s32.totalorder %s25, 3
      %p42 = por %p40, %p41
      %p43 = scmp.ne.s32.totalorder %s35, %s38
      %p44 = scmp.eq.s32.totalorder %s25, 0
      %p45 = por %p43, %p44
      %p46 = scmp.ne.s32.totalorder %s35, %s38
      %p47 = scmp.eq.s32.totalorder %s30, 3
      %p48 = por %p46, %p47
      %p49 = scmp.ne.s32.totalorder %s38, %s39
      %p50 = scmp.eq.s32.totalorder %s30, 0
      %p51 = por %p49, %p50
      %p52 = scmp.ne.s32.totalorder %s38, %s39
      %p53 = scmp.eq.s32.totalorder %s31, 3
      %p54 = por %p52, %p53
      %p56 = scmp.ne.s32.totalorder %s39, %s55
      %p57 = scmp.eq.s32.totalorder %s31, 0
      %p58 = por %p56, %p57
      %s59 = sld [smem:[#allocation3 + %s25]]
      %s60 = sld [smem:[#allocation3 + %s32]]
      %s61 = ssub.s32 %s59, %s60
      %p62 = scmp.eq.s32.totalorder %s61, 0
      %s64 = sadd.s32 %s63, 1
      %s65 = scalar_select %p62, %s63, %s64
      %p68 = pneg %p62
      %p69 = scmp.eq.s32.totalorder %s25, 3
      %p70 = por %p68, %p69
      %p71 = scmp.ne.s32.totalorder %s63, %s66
      %p72 = scmp.eq.s32.totalorder %s25, 0
      %p73 = por %p71, %p72
      %p74 = scmp.ne.s32.totalorder %s63, %s66
      %p75 = scmp.eq.s32.totalorder %s30, 3
      %p76 = por %p74, %p75
      %p77 = scmp.ne.s32.totalorder %s66, %s67
      %p78 = scmp.eq.s32.totalorder %s30, 0
      %p79 = por %p77, %p78
      %p80 = scmp.ne.s32.totalorder %s66, %s67
      %p81 = scmp.eq.s32.totalorder %s31, 3
      %p82 = por %p80, %p81
      %p84 = scmp.ne.s32.totalorder %s67, %s83
      %p85 = scmp.eq.s32.totalorder %s31, 0
      %p86 = por %p84, %p85
      %s87 = sld [smem:[#allocation3 + %s25]]
      %s88 = sld [smem:[#allocation3 + %s32]]
      %s89 = ssub.s32 %s87, %s88
      %p90 = scmp.eq.s32.totalorder %s89, 0
      %s92 = sadd.s32 %s91, 1
      %s93 = scalar_select %p90, %s91, %s92
      %p96 = pneg %p90
      %p97 = scmp.eq.s32.totalorder %s25, 3
      %p98 = por %p96, %p97
      %p99 = scmp.ne.s32.totalorder %s91, %s94
      %p100 = scmp.eq.s32.totalorder %s25, 0
      %p101 = por %p99, %p100
      %p102 = scmp.ne.s32.totalorder %s91, %s94
      %p103 = scmp.eq.s32.totalorder %s30, 3
      %p104 = por %p102, %p103
      %p105 = scmp.ne.s32.totalorder %s94, %s95
      %p106 = scmp.eq.s32.totalorder %s30, 0
      %p107 = por %p105, %p106
      %p108 = scmp.ne.s32.totalorder %s94, %s95
      %p109 = scmp.eq.s32.totalorder %s31, 3
      %p110 = por %p108, %p109
      %p112 = scmp.ne.s32.totalorder %s95, %s111
      %p113 = scmp.eq.s32.totalorder %s31, 0
      %p114 = por %p112, %p113
      %s115 = sld [smem:[#allocation3 + %s25]]
      %s116 = sld [smem:[#allocation3 + %s32]]
      %s117 = ssub.s32 %s115, %s116
      %p118 = scmp.eq.s32.totalorder %s117, 0
      %s120 = sadd.s32 %s119, 1
      %s121 = scalar_select %p118, %s119, %s120
      %p124 = pneg %p118
      %p125 = scmp.eq.s32.totalorder %s25, 3
      %p126 = por %p124, %p125
      %p127 = scmp.ne.s32.totalorder %s119, %s122
      %p128 = scmp.eq.s32.totalorder %s25, 0
      %p129 = por %p127, %p128
      %p130 = scmp.ne.s32.totalorder %s119, %s122
      %p131 = scmp.eq.s32.totalorder %s30, 3
      %p132 = por %p130, %p131
      %p133 = scmp.ne.s32.totalorder %s122, %s123
      %p134 = scmp.eq.s32.totalorder %s30, 0
      %p135 = por %p133, %p134
      %p136 = scmp.ne.s32.totalorder %s122, %s123
      %p137 = scmp.eq.s32.totalorder %s31, 3
      %p138 = por %p136, %p137
      %p140 = scmp.ne.s32.totalorder %s123, %s139
      %p141 = scmp.eq.s32.totalorder %s31, 0
      %p142 = por %p140, %p141
      %s143 = sld [smem:[#allocation3 + %s25]]
      %s144 = sld [smem:[#allocation3 + %s32]]
      %s145 = ssub.s32 %s143, %s144
      %p146 = scmp.eq.s32.totalorder %s145, 0
      %s148 = sadd.s32 %s147, 1
      %s149 = scalar_select %p146, %s147, %s148
      %p152 = pneg %p146
      %p153 = scmp.eq.s32.totalorder %s25, 3
      %p154 = por %p152, %p153
      %p155 = scmp.ne.s32.totalorder %s147, %s150
      %p156 = scmp.eq.s32.totalorder %s25, 0
      %p157 = por %p155, %p156
      %p158 = scmp.ne.s32.totalorder %s147, %s150
      %p159 = scmp.eq.s32.totalorder %s30, 3
      %p160 = por %p158, %p159
      %p161 = scmp.ne.s32.totalorder %s150, %s151
      %p162 = scmp.eq.s32.totalorder %s30, 0
      %p163 = por %p161, %p162
      %p164 = scmp.ne.s32.totalorder %s150, %s151
      %p165 = scmp.eq.s32.totalorder %s31, 3
      %p166 = por %p164, %p165
      %p168 = scmp.ne.s32.totalorder %s151, %s167
      %p169 = scmp.eq.s32.totalorder %s31, 0
      %p170 = por %p168, %p169
      %s171 = ssub.s32 %s25, %s32
      %p172 = scmp.eq.s32.totalorder %s171, 0
      %s174 = sadd.s32 %s173, 1
      %s175 = scalar_select %p172, %s173, %s174
      %p178 = pneg %p172
      %p179 = scmp.eq.s32.totalorder %s25, 3
      %p180 = por %p178, %p179
      %p181 = scmp.ne.s32.totalorder %s173, %s176
      %p182 = scmp.eq.s32.totalorder %s25, 0
      %p183 = por %p181, %p182
      %p184 = scmp.ne.s32.totalorder %s173, %s176
      %p185 = scmp.eq.s32.totalorder %s30, 3
      %p186 = por %p184, %p185
      %p187 = scmp.ne.s32.totalorder %s176, %s177
      %p188 = scmp.eq.s32.totalorder %s30, 0
      %p189 = por %p187, %p188
      %p190 = scmp.ne.s32.totalorder %s176, %s177
      %p191 = scmp.eq.s32.totalorder %s31, 3
      %p192 = por %p190, %p191
      %p194 = scmp.ne.s32.totalorder %s177, %s193
      %p195 = scmp.eq.s32.totalorder %s31, 0
      %p196 = por %p194, %p195
      %p197 = scmp.le.s32.totalorder 1, %s25
      %p198 = scmp.lt.s32.totalorder %s25, 5
      %p199 = pnand %p197, %p198
      %p200 = pneg %p199
      // Predicated region
      $region9: #{tpu_custom_call.1} parent=5 // pred_check
        _
      $region10: #{tpu_custom_call.1} parent=5 // pred_check_branch
        %202 = sbr.rel (%p199) target = $region12
      $region11: #{tpu_custom_call.1} parent=5 // pred_region
        %s203 = ssub.s32 %s25, 1
      $region12: #{tpu_custom_call.1} parent=5 // pred_fallthru
        _
      %p204 = scmp.lt.s32.totalorder %s25, 4
      // Predicated region
      $region13: #{tpu_custom_call.1} parent=5 // pred_check
        %p205 = pneg %p204
      $region14: #{tpu_custom_call.1} parent=5 // pred_check_branch
        %207 = sbr.rel (%p205) target = $region16
      $region15: #{tpu_custom_call.1} parent=5 // pred_region
        // Predicated region
        $region17: #{tpu_custom_call.1} parent=15 // pred_check
          %p208 = pneg %p45
        $region18: #{tpu_custom_call.1} parent=15 // pred_check_branch
          %210 = sbr.rel (%p208) target = $region20
        $region19: #{tpu_custom_call.1} parent=15 // pred_region
          %s211 = sand.u32 %s35, 1
          %s212 = scalar_lea.sflag [#allocation5], %s211
          %s213 = sand.u32 %s35, 1
          %s214 = smul.addr %s213, 64
          %s215 = scalar_lea.vmem [#allocation4], %s214
          %s216 = smul.u32 16, %s25
          %s218 = ssub.s32 1024, 1024
          %219 = vsyncadd %s212, %s218
          %s220 = smul.addr %s216, 64
          %s221 = scalar_lea.hbm %s1, %s220
          %s222 = sshll.u32 %s215, 4
          %s223 = int_to_ptr.vmem [resolvable:$true] %s222
          %228 = dma.hbm_to_vmem [thread:$0]  %s221, 1024, %s223, %s212, 64, 64, 4
        $region20: #{tpu_custom_call.1} parent=15 // pred_fallthru
          _
        // Predicated region
        $region21: #{tpu_custom_call.1} parent=15 // pred_check
          %p229 = pneg %p73
        $region22: #{tpu_custom_call.1} parent=15 // pred_check_branch
          %231 = sbr.rel (%p229) target = $region24
        $region23: #{tpu_custom_call.1} parent=15 // pred_region
          %s232 = sand.u32 %s25, 1
          %s233 = scalar_lea.sflag [#allocation8], %s232
          %s234 = sand.u32 %s63, 1
          %s235 = smul.addr %s234, 128
          %s236 = scalar_lea.vmem [#allocation7], %s235
          %s237 = sld [smem:[#allocation3 + %s25]]
          %s239 = ssub.s32 2048, 2048
          %240 = vsyncadd %s233, %s239
          %s241 = smul.addr %s237, 32
          %s242 = smul.addr %s241, 64
          %s243 = scalar_lea.hbm %s2, %s242
          %s244 = sshll.u32 %s236, 4
          %s245 = int_to_ptr.vmem [resolvable:$true] %s244
          %250 = dma.hbm_to_vmem [thread:$0]  %s243, 2048, %s245, %s233, 128, 128, 8
        $region24: #{tpu_custom_call.1} parent=15 // pred_fallthru
          _
        // Predicated region
        $region25: #{tpu_custom_call.1} parent=15 // pred_check
          %p251 = pneg %p101
        $region26: #{tpu_custom_call.1} parent=15 // pred_check_branch
          %253 = sbr.rel (%p251) target = $region28
        $region27: #{tpu_custom_call.1} parent=15 // pred_region
          %s254 = sld [smem:[#allocation3 + %s25]]
          %p255 = scmp.lt.s32.totalorder %s254, 3
          %s256 = scalar_select %p255, %s254, 3
          %s257 = smul.addr %s256, 2
          %s258 = scalar_lea.vmem %s3, %s257
          %s259 = sld [smem:[#allocation3 + %s25]]
        $region28: #{tpu_custom_call.1} parent=15 // pred_fallthru
          _
        // Predicated region
        $region29: #{tpu_custom_call.1} parent=15 // pred_check
          %p260 = pneg %p129
        $region30: #{tpu_custom_call.1} parent=15 // pred_check_branch
          %262 = sbr.rel (%p260) target = $region32
        $region31: #{tpu_custom_call.1} parent=15 // pred_region
          %s263 = sand.u32 %s25, 1
          %s264 = scalar_lea.sflag [#allocation8], %s263
          %s265 = sand.u32 %s119, 1
          %s266 = smul.addr %s265, 128
          %s267 = scalar_lea.vmem [#allocation9], %s266
          %s268 = sld [smem:[#allocation3 + %s25]]
          %s270 = ssub.s32 2048, 2048
          %271 = vsyncadd %s264, %s270
          %s272 = smul.addr %s268, 32
          %s273 = smul.addr %s272, 64
          %s274 = scalar_lea.hbm %s4, %s273
          %s275 = sshll.u32 %s267, 4
          %s276 = int_to_ptr.vmem [resolvable:$true] %s275
          %281 = dma.hbm_to_vmem [thread:$0]  %s274, 2048, %s276, %s264, 64, 64, 4
        $region32: #{tpu_custom_call.1} parent=15 // pred_fallthru
          _
        // Predicated region
        $region33: #{tpu_custom_call.1} parent=15 // pred_check
          %p282 = pneg %p157
        $region34: #{tpu_custom_call.1} parent=15 // pred_check_branch
          %284 = sbr.rel (%p282) target = $region36
        $region35: #{tpu_custom_call.1} parent=15 // pred_region
          %s285 = sld [smem:[#allocation3 + %s25]]
          %p286 = scmp.lt.s32.totalorder %s285, 3
          %s287 = scalar_select %p286, %s285, 3
          %s288 = scalar_lea.vmem %s5, %s287
          %s289 = sld [smem:[#allocation3 + %s25]]
        $region36: #{tpu_custom_call.1} parent=15 // pred_fallthru
          _
      $region16: #{tpu_custom_call.1} parent=5 // pred_fallthru
        _
      %p290 = scmp.le.s32.totalorder 1, %s25
      %p291 = scmp.lt.s32.totalorder %s25, 5
      %p292 = pnand %p290, %p291
      %p293 = pneg %p292
      // Predicated region
      $region37: #{tpu_custom_call.1} parent=5 // pred_check
        _
      $region38: #{tpu_custom_call.1} parent=5 // pred_check_branch
        %295 = sbr.rel (%p292) target = $region40
      $region39: #{tpu_custom_call.1} parent=5 // pred_region
        %s296 = ssub.s32 %s25, 1
        %s297 = sand.u32 %s38, 1
        %s298 = scalar_lea.sflag [#allocation5], %s297
        %s299 = sand.u32 %s38, 1
        %s300 = smul.addr %s299, 64
        %s301 = scalar_lea.vmem [#allocation4], %s300
        // Predicated region
        $region41: #{tpu_custom_call.1} parent=39 // pred_check
          %p302 = pneg %p51
        $region42: #{tpu_custom_call.1} parent=39 // pred_check_branch
          %304 = sbr.rel (%p302) target = $region44
        $region43: #{tpu_custom_call.1} parent=39 // pred_region
          %305 = dma.done %s298, 1024
        $region44: #{tpu_custom_call.1} parent=39 // pred_fallthru
          _
        %s306 = sand.u32 %s30, 1
        %s307 = scalar_lea.sflag [#allocation8], %s306
        %s308 = sand.u32 %s66, 1
        %s309 = smul.addr %s308, 128
        %s310 = scalar_lea.vmem [#allocation7], %s309
        // Predicated region
        $region45: #{tpu_custom_call.1} parent=39 // pred_check
          %p311 = pneg %p79
        $region46: #{tpu_custom_call.1} parent=39 // pred_check_branch
          %313 = sbr.rel (%p311) target = $region48
        $region47: #{tpu_custom_call.1} parent=39 // pred_region
          %314 = dma.done %s307, 2048
        $region48: #{tpu_custom_call.1} parent=39 // pred_fallthru
          _
        %s315 = sand.u32 %s30, 1
        %s316 = scalar_lea.sflag [#allocation8], %s315
        %s317 = sand.u32 %s122, 1
        %s318 = smul.addr %s317, 128
        %s319 = scalar_lea.vmem [#allocation9], %s318
        // Predicated region
        $region49: #{tpu_custom_call.1} parent=39 // pred_check
          %p320 = pneg %p135
        $region50: #{tpu_custom_call.1} parent=39 // pred_check_branch
          %322 = sbr.rel (%p320) target = $region52
        $region51: #{tpu_custom_call.1} parent=39 // pred_region
          %323 = dma.done %s316, 2048
        $region52: #{tpu_custom_call.1} parent=39 // pred_fallthru
          _
        %s324 = sand.u32 %s38, 1
        %s325 = scalar_lea.sflag [#allocation5], %s324
        %s326 = sand.u32 %s38, 1
        %s327 = smul.addr %s326, 64
        %s328 = scalar_lea.vmem [#allocation4], %s327
        %p329 = pneg %p51
        %p330 = pneg %p48
        %s331 = sand.u32 %s30, 1
        %s332 = scalar_lea.sflag [#allocation8], %s331
        %s333 = sand.u32 %s66, 1
        %s334 = smul.addr %s333, 128
        %s335 = scalar_lea.vmem [#allocation7], %s334
        %p336 = pneg %p79
        %p337 = pneg %p76
        %s338 = sld [smem:[#allocation3 + %s30]]
        %p339 = scmp.lt.s32.totalorder %s338, 3
        %s340 = scalar_select %p339, %s338, 3
        %s341 = smul.addr %s340, 2
        %s342 = scalar_lea.vmem %s3, %s341
        %p343 = pneg %p107
        %p344 = pneg %p104
        %s345 = sand.u32 %s30, 1
        %s346 = scalar_lea.sflag [#allocation8], %s345
        %s347 = sand.u32 %s122, 1
        %s348 = smul.addr %s347, 128
        %s349 = scalar_lea.vmem [#allocation9], %s348
        %p350 = pneg %p135
        %p351 = pneg %p132
        %s352 = sld [smem:[#allocation3 + %s30]]
        %p353 = scmp.lt.s32.totalorder %s352, 3
        %s354 = scalar_select %p353, %s352, 3
        %s355 = scalar_lea.vmem %s5, %s354
        %p356 = pneg %p163
        %p357 = pneg %p160
        %p358 = pneg %p189
        %p359 = pneg %p186
        %s360 = sand.u32 %s176, 1
        %s361 = scalar_lea.sflag [#allocation6], %s360
        %s362 = sand.u32 %s176, 1
        %s363 = smul.addr %s362, 128
        %s364 = scalar_lea.vmem [#allocation10], %s363
        %s365 = smul.u32 16, %s30
        %s366 = sld [smem:[#allocation3 + %s30]]
        %s367 = sld [smem:[#allocation3 + %s30]]
        %p368 = scmp.lt.s32.totalorder %s367, 3
        %s369 = scalar_select %p368, %s367, 3
        %s370 = smul.addr %s369, 2
        %s371 = scalar_lea.vmem %s3, %s370
        %s372 = sld [smem:[#allocation3 + %s30]]
        %s373 = sld [smem:[#allocation3 + %s30]]
        %s374 = sld [smem:[#allocation3 + %s30]]
        %p375 = scmp.lt.s32.totalorder %s374, 3
        %s376 = scalar_select %p375, %s374, 3
        %s377 = scalar_lea.vmem %s5, %s376
        %s378 = sld [smem:[#allocation3 + %s30]]
        %s379 = smul.u32 16, %s30
        %v381 = vld [vmem:[%s301] sm:$0xf]
        %v382 = vld [vmem:[%s301 + $0x4] sm:$0xf]
        %v383 = vld [vmem:[%s301 + $0x8] sm:$0xf]
        %v384 = vld [vmem:[%s301 + $0xc] sm:$0xf]
        %v385 = vld [vmem:[%s301 + $0x10] sm:$0xf]
        %v386 = vld [vmem:[%s301 + $0x14] sm:$0xf]
        %v387 = vld [vmem:[%s301 + $0x18] sm:$0xf]
        %v388 = vld [vmem:[%s301 + $0x1c] sm:$0xf]
        %v389 = vld [vmem:[%s301 + $0x20] sm:$0xf]
        %v390 = vld [vmem:[%s301 + $0x24] sm:$0xf]
        %v391 = vld [vmem:[%s301 + $0x28] sm:$0xf]
        %v392 = vld [vmem:[%s301 + $0x2c] sm:$0xf]
        %v393 = vld [vmem:[%s301 + $0x30] sm:$0xf]
        %v394 = vld [vmem:[%s301 + $0x34] sm:$0xf]
        %v395 = vld [vmem:[%s301 + $0x38] sm:$0xf]
        %v396 = vld [vmem:[%s301 + $0x3c] sm:$0xf]
        %v397 = vld [vmem:[%s310] sm:$0xff]
        %v398 = vld [vmem:[%s310 + $0x8] sm:$0xff]
        %v399 = vld [vmem:[%s310 + $0x10] sm:$0xff]
        %v400 = vld [vmem:[%s310 + $0x18] sm:$0xff]
        %v401 = vld [vmem:[%s310 + $0x20] sm:$0xff]
        %v402 = vld [vmem:[%s310 + $0x28] sm:$0xff]
        %v403 = vld [vmem:[%s310 + $0x30] sm:$0xff]
        %v404 = vld [vmem:[%s310 + $0x38] sm:$0xff]
        %v405 = vld [vmem:[%s310 + $0x40] sm:$0xff]
        %v406 = vld [vmem:[%s310 + $0x48] sm:$0xff]
        %v407 = vld [vmem:[%s310 + $0x50] sm:$0xff]
        %v408 = vld [vmem:[%s310 + $0x58] sm:$0xff]
        %v409 = vld [vmem:[%s310 + $0x60] sm:$0xff]
        %v410 = vld [vmem:[%s310 + $0x68] sm:$0xff]
        %v411 = vld [vmem:[%s310 + $0x70] sm:$0xff]
        %v412 = vld [vmem:[%s310 + $0x78] sm:$0xff]
        %v413 = vld [vmem:[%s371] sm:$0x3]
        %v415 = vlaneseq
        %v416 = vshrl.u32 %v415, 7
        %v417 = vsub.s32 0, %v416
        %v418 = vrot.slane %v413, %v417
        %v419 = vlaneseq
        %v420 = vshrl.u32 %v419, 7
        %v421 = vsub.s32 1, %v420
        %v422 = vrot.slane %v413, %v421
        %v441 = vunpack.c.l.b16 %v381
        %v442 = vunpack.c.l.b16 %v382
        %v443 = vunpack.c.l.b16 %v383
        %v444 = vunpack.c.l.b16 %v384
        %v445 = vunpack.c.l.b16 %v385
        %v446 = vunpack.c.l.b16 %v386
        %v447 = vunpack.c.l.b16 %v387
        %v448 = vunpack.c.l.b16 %v388
        %v449 = vunpack.c.l.b16 %v389
        %v450 = vunpack.c.l.b16 %v390
        %v451 = vunpack.c.l.b16 %v391
        %v452 = vunpack.c.l.b16 %v392
        %v453 = vunpack.c.l.b16 %v393
        %v454 = vunpack.c.l.b16 %v394
        %v455 = vunpack.c.l.b16 %v395
        %v456 = vunpack.c.l.b16 %v396
        %v457 = vpack.c.b16 %v442, %v441
        %v458 = vpack.c.b16 %v444, %v443
        %v459 = vpack.c.b16 %v446, %v445
        %v460 = vpack.c.b16 %v448, %v447
        %v461 = vpack.c.b16 %v450, %v449
        %v462 = vpack.c.b16 %v452, %v451
        %v463 = vpack.c.b16 %v454, %v453
        %v464 = vpack.c.b16 %v456, %v455
        %v489 = vunpack.c.l.b16 %v397
        %v490 = vunpack.c.h.b16 %v397
        %v491 = vunpack.c.l.b16 %v398
        %v492 = vunpack.c.h.b16 %v398
        %v493 = vunpack.c.l.b16 %v399
        %v494 = vunpack.c.h.b16 %v399
        %v495 = vunpack.c.l.b16 %v400
        %v496 = vunpack.c.h.b16 %v400
        %v497 = vunpack.c.l.b16 %v401
        %v498 = vunpack.c.h.b16 %v401
        %v499 = vunpack.c.l.b16 %v402
        %v500 = vunpack.c.h.b16 %v402
        %v501 = vunpack.c.l.b16 %v403
        %v502 = vunpack.c.h.b16 %v403
        %v503 = vunpack.c.l.b16 %v404
        %v504 = vunpack.c.h.b16 %v404
        %v505 = vunpack.c.l.b16 %v405
        %v506 = vunpack.c.h.b16 %v405
        %v507 = vunpack.c.l.b16 %v406
        %v508 = vunpack.c.h.b16 %v406
        %v509 = vunpack.c.l.b16 %v407
        %v510 = vunpack.c.h.b16 %v407
        %v511 = vunpack.c.l.b16 %v408
        %v512 = vunpack.c.h.b16 %v408
        %v513 = vunpack.c.l.b16 %v409
        %v514 = vunpack.c.h.b16 %v409
        %v515 = vunpack.c.l.b16 %v410
        %v516 = vunpack.c.h.b16 %v410
        %v517 = vunpack.c.l.b16 %v411
        %v518 = vunpack.c.h.b16 %v411
        %v519 = vunpack.c.l.b16 %v412
        %v520 = vunpack.c.h.b16 %v412
        %v521 = vpack.c.b16 %v491, %v489
        %v522 = vpack.c.b16 %v492, %v490
        %v523 = vpack.c.b16 %v495, %v493
        %v524 = vpack.c.b16 %v496, %v494
        %v525 = vpack.c.b16 %v499, %v497
        %v526 = vpack.c.b16 %v500, %v498
        %v527 = vpack.c.b16 %v503, %v501
        %v528 = vpack.c.b16 %v504, %v502
        %v529 = vpack.c.b16 %v507, %v505
        %v530 = vpack.c.b16 %v508, %v506
        %v531 = vpack.c.b16 %v511, %v509
        %v532 = vpack.c.b16 %v512, %v510
        %v533 = vpack.c.b16 %v515, %v513
        %v534 = vpack.c.b16 %v516, %v514
        %v535 = vpack.c.b16 %v519, %v517
        %v536 = vpack.c.b16 %v520, %v518
        %553 = vmatprep.subr.bf16.mxu0 %v522
        %554 = vmatpush1.bf16.msra.mxu0 %v521
        %555 = vmatprep.subr.bf16.mxu0 %v524
        %556 = vmatpush1.bf16.msra.mxu0 %v523
        %557 = vmatprep.subr.bf16.mxu0 %v526
        %558 = vmatpush1.bf16.msra.mxu0 %v525
        %559 = vmatprep.subr.bf16.mxu0 %v528
        %560 = vmatpush1.bf16.msra.mxu0 %v527
        %561 = vmatprep.subr.bf16.mxu0 %v530
        %562 = vmatpush1.bf16.msra.mxu0 %v529
        %563 = vmatprep.subr.bf16.mxu0 %v532
        %564 = vmatpush1.bf16.msra.mxu0 %v531
        %565 = vmatprep.subr.bf16.mxu0 %v534
        %566 = vmatpush1.bf16.msra.mxu0 %v533
        %567 = vmatprep.subr.bf16.mxu0 %v536
        %568 = vmatpush1.bf16.msra.mxu0 %v535
        %569 = vmatprep.subr.bf16.mxu0 0
        %570 = vmatpush1.bf16.msra.mxu0 0
        %571 = vmatprep.subr.bf16.mxu0 0
        %572 = vmatpush1.bf16.msra.mxu0 0
        %573 = vmatprep.subr.bf16.mxu0 0
        %574 = vmatpush1.bf16.msra.mxu0 0
        %575 = vmatprep.subr.bf16.mxu0 0
        %576 = vmatpush1.bf16.msra.mxu0 0
        %577 = vmatprep.subr.bf16.mxu0 0
        %578 = vmatpush1.bf16.msra.mxu0 0
        %579 = vmatprep.subr.bf16.mxu0 0
        %580 = vmatpush1.bf16.msra.mxu0 0
        %581 = vmatprep.subr.bf16.mxu0 0
        %582 = vmatpush1.bf16.msra.mxu0 0
        %583 = vmatprep.subr.bf16.mxu0 0
        %584 = vmatpush1.bf16.msra.mxu0 0
        %585 = vmatprep.mubr.bf16.mxu0 0
        %586 = vmatmul.mubr.bf16.gmra.mrb[0].mxu0 %v457
        %v587 = vpop.f32.mrb[0].mxu0
        %v588 = vadd.f32 %v418, %v587
        %v589 = vpop.f32.mrb[0].mxu0
        %v590 = vadd.f32 %v422, %v589
        %v591 = vpop.f32.mrb[0].mxu0
        %v592 = vadd.f32 %v418, %v591
        %v593 = vpop.f32.mrb[0].mxu0
        %v594 = vadd.f32 %v422, %v593
        %595 = vmatprep.mubr.bf16.mxu0 0
        %596 = vmatmul.mubr.bf16.gmra.mrb[0].mxu0 %v458
        %v597 = vpop.f32.mrb[0].mxu0
        %v598 = vadd.f32 %v418, %v597
        %v599 = vpop.f32.mrb[0].mxu0
        %v600 = vadd.f32 %v422, %v599
        %v601 = vpop.f32.mrb[0].mxu0
        %v602 = vadd.f32 %v418, %v601
        %v603 = vpop.f32.mrb[0].mxu0
        %v604 = vadd.f32 %v422, %v603
        %605 = vmatprep.mubr.bf16.mxu0 0
        %606 = vmatmul.mubr.bf16.gmra.mrb[0].mxu0 %v459
        %v607 = vpop.f32.mrb[0].mxu0
        %v608 = vadd.f32 %v418, %v607
        %v609 = vpop.f32.mrb[0].mxu0
        %v610 = vadd.f32 %v422, %v609
        %v611 = vpop.f32.mrb[0].mxu0
        %v612 = vadd.f32 %v418, %v611
        %v613 = vpop.f32.mrb[0].mxu0
        %v614 = vadd.f32 %v422, %v613
        %615 = vmatprep.mubr.bf16.mxu0 0
        %616 = vmatmul.mubr.bf16.gmra.mrb[0].mxu0 %v460
        %v617 = vpop.f32.mrb[0].mxu0
        %v618 = vadd.f32 %v418, %v617
        %v619 = vpop.f32.mrb[0].mxu0
        %v620 = vadd.f32 %v422, %v619
        %v621 = vpop.f32.mrb[0].mxu0
        %v622 = vadd.f32 %v418, %v621
        %v623 = vpop.f32.mrb[0].mxu0
        %v624 = vadd.f32 %v422, %v623
        %625 = vmatprep.mubr.bf16.mxu0 0
        %626 = vmatmul.mubr.bf16.gmra.mrb[0].mxu0 %v461
        %v627 = vpop.f32.mrb[0].mxu0
        %v628 = vadd.f32 %v418, %v627
        %v629 = vpop.f32.mrb[0].mxu0
        %v630 = vadd.f32 %v422, %v629
        %v631 = vpop.f32.mrb[0].mxu0
        %v632 = vadd.f32 %v418, %v631
        %v633 = vpop.f32.mrb[0].mxu0
        %v634 = vadd.f32 %v422, %v633
        %635 = vmatprep.mubr.bf16.mxu0 0
        %636 = vmatmul.mubr.bf16.gmra.mrb[0].mxu0 %v462
        %v637 = vpop.f32.mrb[0].mxu0
        %v638 = vadd.f32 %v418, %v637
        %v639 = vpop.f32.mrb[0].mxu0
        %v640 = vadd.f32 %v422, %v639
        %v641 = vpop.f32.mrb[0].mxu0
        %v642 = vadd.f32 %v418, %v641
        %v643 = vpop.f32.mrb[0].mxu0
        %v644 = vadd.f32 %v422, %v643
        %645 = vmatprep.mubr.bf16.mxu0 0
        %646 = vmatmul.mubr.bf16.gmra.mrb[0].mxu0 %v463
        %v647 = vpop.f32.mrb[0].mxu0
        %v648 = vadd.f32 %v418, %v647
        %v649 = vpop.f32.mrb[0].mxu0
        %v650 = vadd.f32 %v422, %v649
        %v651 = vpop.f32.mrb[0].mxu0
        %v652 = vadd.f32 %v418, %v651
        %v653 = vpop.f32.mrb[0].mxu0
        %v654 = vadd.f32 %v422, %v653
        %655 = vmatprep.mubr.bf16.mxu0 0
        %656 = vmatmul.mubr.bf16.gmra.mrb[0].mxu0 %v464
        %v657 = vpop.f32.mrb[0].mxu0
        %v658 = vadd.f32 %v418, %v657
        %v659 = vpop.f32.mrb[0].mxu0
        %v660 = vadd.f32 %v422, %v659
        %v661 = vpop.f32.mrb[0].mxu0
        %v662 = vadd.f32 %v418, %v661
        %v663 = vpop.f32.mrb[0].mxu0
        %v664 = vadd.f32 %v422, %v663
        %665 = vdwg.mxu0
        %v666 = vmul.f32 %v588, %v588
        %v667 = vmul.f32 %v590, %v590
        %v668 = vmul.f32 %v592, %v592
        %v669 = vmul.f32 %v594, %v594
        %v670 = vmul.f32 %v598, %v598
        %v671 = vmul.f32 %v600, %v600
        %v672 = vmul.f32 %v602, %v602
        %v673 = vmul.f32 %v604, %v604
        %v674 = vmul.f32 %v608, %v608
        %v675 = vmul.f32 %v610, %v610
        %v676 = vmul.f32 %v612, %v612
        %v677 = vmul.f32 %v614, %v614
        %v678 = vmul.f32 %v618, %v618
        %v679 = vmul.f32 %v620, %v620
        %v680 = vmul.f32 %v622, %v622
        %v681 = vmul.f32 %v624, %v624
        %v682 = vmul.f32 %v628, %v628
        %v683 = vmul.f32 %v630, %v630
        %v684 = vmul.f32 %v632, %v632
        %v685 = vmul.f32 %v634, %v634
        %v686 = vmul.f32 %v638, %v638
        %v687 = vmul.f32 %v640, %v640
        %v688 = vmul.f32 %v642, %v642
        %v689 = vmul.f32 %v644, %v644
        %v690 = vmul.f32 %v648, %v648
        %v691 = vmul.f32 %v650, %v650
        %v692 = vmul.f32 %v652, %v652
        %v693 = vmul.f32 %v654, %v654
        %v694 = vmul.f32 %v658, %v658
        %v695 = vmul.f32 %v660, %v660
        %v696 = vmul.f32 %v662, %v662
        %v697 = vmul.f32 %v664, %v664
        %v698 = vmul.f32 %v588, %v666
        %v699 = vmul.f32 %v590, %v667
        %v700 = vmul.f32 %v592, %v668
        %v701 = vmul.f32 %v594, %v669
        %v702 = vmul.f32 %v598, %v670
        %v703 = vmul.f32 %v600, %v671
        %v704 = vmul.f32 %v602, %v672
        %v705 = vmul.f32 %v604, %v673
        %v706 = vmul.f32 %v608, %v674
        %v707 = vmul.f32 %v610, %v675
        %v708 = vmul.f32 %v612, %v676
        %v709 = vmul.f32 %v614, %v677
        %v710 = vmul.f32 %v618, %v678
        %v711 = vmul.f32 %v620, %v679
        %v712 = vmul.f32 %v622, %v680
        %v713 = vmul.f32 %v624, %v681
        %v714 = vmul.f32 %v628, %v682
        %v715 = vmul.f32 %v630, %v683
        %v716 = vmul.f32 %v632, %v684
        %v717 = vmul.f32 %v634, %v685
        %v718 = vmul.f32 %v638, %v686
        %v719 = vmul.f32 %v640, %v687
        %v720 = vmul.f32 %v642, %v688
        %v721 = vmul.f32 %v644, %v689
        %v722 = vmul.f32 %v648, %v690
        %v723 = vmul.f32 %v650, %v691
        %v724 = vmul.f32 %v652, %v692
        %v725 = vmul.f32 %v654, %v693
        %v726 = vmul.f32 %v658, %v694
        %v727 = vmul.f32 %v660, %v695
        %v728 = vmul.f32 %v662, %v696
        %v729 = vmul.f32 %v664, %v697
        %v730 = vmul.f32 %v698, 0.044715
        %v731 = vmul.f32 %v699, 0.044715
        %v732 = vmul.f32 %v700, 0.044715
        %v733 = vmul.f32 %v701, 0.044715
        %v734 = vmul.f32 %v702, 0.044715
        %v735 = vmul.f32 %v703, 0.044715
        %v736 = vmul.f32 %v704, 0.044715
        %v737 = vmul.f32 %v705, 0.044715
        %v738 = vmul.f32 %v706, 0.044715
        %v739 = vmul.f32 %v707, 0.044715
        %v740 = vmul.f32 %v708, 0.044715
        %v741 = vmul.f32 %v709, 0.044715
        %v742 = vmul.f32 %v710, 0.044715
        %v743 = vmul.f32 %v711, 0.044715
        %v744 = vmul.f32 %v712, 0.044715
        %v745 = vmul.f32 %v713, 0.044715
        %v746 = vmul.f32 %v714, 0.044715
        %v747 = vmul.f32 %v715, 0.044715
        %v748 = vmul.f32 %v716, 0.044715
        %v749 = vmul.f32 %v717, 0.044715
        %v750 = vmul.f32 %v718, 0.044715
        %v751 = vmul.f32 %v719, 0.044715
        %v752 = vmul.f32 %v720, 0.044715
        %v753 = vmul.f32 %v721, 0.044715
        %v754 = vmul.f32 %v722, 0.044715
        %v755 = vmul.f32 %v723, 0.044715
        %v756 = vmul.f32 %v724, 0.044715
        %v757 = vmul.f32 %v725, 0.044715
        %v758 = vmul.f32 %v726, 0.044715
        %v759 = vmul.f32 %v727, 0.044715
        %v760 = vmul.f32 %v728, 0.044715
        %v761 = vmul.f32 %v729, 0.044715
        %v762 = vadd.f32 %v588, %v730
        %v763 = vadd.f32 %v590, %v731
        %v764 = vadd.f32 %v592, %v732
        %v765 = vadd.f32 %v594, %v733
        %v766 = vadd.f32 %v598, %v734
        %v767 = vadd.f32 %v600, %v735
        %v768 = vadd.f32 %v602, %v736
        %v769 = vadd.f32 %v604, %v737
        %v770 = vadd.f32 %v608, %v738
        %v771 = vadd.f32 %v610, %v739
        %v772 = vadd.f32 %v612, %v740
        %v773 = vadd.f32 %v614, %v741
        %v774 = vadd.f32 %v618, %v742
        %v775 = vadd.f32 %v620, %v743
        %v776 = vadd.f32 %v622, %v744
        %v777 = vadd.f32 %v624, %v745
        %v778 = vadd.f32 %v628, %v746
        %v779 = vadd.f32 %v630, %v747
        %v780 = vadd.f32 %v632, %v748
        %v781 = vadd.f32 %v634, %v749
        %v782 = vadd.f32 %v638, %v750
        %v783 = vadd.f32 %v640, %v751
        %v784 = vadd.f32 %v642, %v752
        %v785 = vadd.f32 %v644, %v753
        %v786 = vadd.f32 %v648, %v754
        %v787 = vadd.f32 %v650, %v755
        %v788 = vadd.f32 %v652, %v756
        %v789 = vadd.f32 %v654, %v757
        %v790 = vadd.f32 %v658, %v758
        %v791 = vadd.f32 %v660, %v759
        %v792 = vadd.f32 %v662, %v760
        %v793 = vadd.f32 %v664, %v761
        %v794 = vmul.f32 %v762, 0.7978846
        %v795 = vmul.f32 %v763, 0.7978846
        %v796 = vmul.f32 %v764, 0.7978846
        %v797 = vmul.f32 %v765, 0.7978846
        %v798 = vmul.f32 %v766, 0.7978846
        %v799 = vmul.f32 %v767, 0.7978846
        %v800 = vmul.f32 %v768, 0.7978846
        %v801 = vmul.f32 %v769, 0.7978846
        %v802 = vmul.f32 %v770, 0.7978846
        %v803 = vmul.f32 %v771, 0.7978846
        %v804 = vmul.f32 %v772, 0.7978846
        %v805 = vmul.f32 %v773, 0.7978846
        %v806 = vmul.f32 %v774, 0.7978846
        %v807 = vmul.f32 %v775, 0.7978846
        %v808 = vmul.f32 %v776, 0.7978846
        %v809 = vmul.f32 %v777, 0.7978846
        %v810 = vmul.f32 %v778, 0.7978846
        %v811 = vmul.f32 %v779, 0.7978846
        %v812 = vmul.f32 %v780, 0.7978846
        %v813 = vmul.f32 %v781, 0.7978846
        %v814 = vmul.f32 %v782, 0.7978846
        %v815 = vmul.f32 %v783, 0.7978846
        %v816 = vmul.f32 %v784, 0.7978846
        %v817 = vmul.f32 %v785, 0.7978846
        %v818 = vmul.f32 %v786, 0.7978846
        %v819 = vmul.f32 %v787, 0.7978846
        %v820 = vmul.f32 %v788, 0.7978846
        %v821 = vmul.f32 %v789, 0.7978846
        %v822 = vmul.f32 %v790, 0.7978846
        %v823 = vmul.f32 %v791, 0.7978846
        %v824 = vmul.f32 %v792, 0.7978846
        %v825 = vmul.f32 %v793, 0.7978846
        %v826 = vtanh.pop %v794
        %v827 = vtanh.pop %v795
        %v828 = vtanh.pop %v796
        %v829 = vtanh.pop %v797
        %v830 = vtanh.pop %v798
        %v831 = vtanh.pop %v799
        %v832 = vtanh.pop %v800
        %v833 = vtanh.pop %v801
        %v834 = vtanh.pop %v802
        %v835 = vtanh.pop %v803
        %v836 = vtanh.pop %v804
        %v837 = vtanh.pop %v805
        %v838 = vtanh.pop %v806
        %v839 = vtanh.pop %v807
        %v840 = vtanh.pop %v808
        %v841 = vtanh.pop %v809
        %v842 = vtanh.pop %v810
        %v843 = vtanh.pop %v811
        %v844 = vtanh.pop %v812
        %v845 = vtanh.pop %v813
        %v846 = vtanh.pop %v814
        %v847 = vtanh.pop %v815
        %v848 = vtanh.pop %v816
        %v849 = vtanh.pop %v817
        %v850 = vtanh.pop %v818
        %v851 = vtanh.pop %v819
        %v852 = vtanh.pop %v820
        %v853 = vtanh.pop %v821
        %v854 = vtanh.pop %v822
        %v855 = vtanh.pop %v823
        %v856 = vtanh.pop %v824
        %v857 = vtanh.pop %v825
        %v858 = vadd.f32 %v826, 1.0
        %v859 = vadd.f32 %v827, 1.0
        %v860 = vadd.f32 %v828, 1.0
        %v861 = vadd.f32 %v829, 1.0
        %v862 = vadd.f32 %v830, 1.0
        %v863 = vadd.f32 %v831, 1.0
        %v864 = vadd.f32 %v832, 1.0
        %v865 = vadd.f32 %v833, 1.0
        %v866 = vadd.f32 %v834, 1.0
        %v867 = vadd.f32 %v835, 1.0
        %v868 = vadd.f32 %v836, 1.0
        %v869 = vadd.f32 %v837, 1.0
        %v870 = vadd.f32 %v838, 1.0
        %v871 = vadd.f32 %v839, 1.0
        %v872 = vadd.f32 %v840, 1.0
        %v873 = vadd.f32 %v841, 1.0
        %v874 = vadd.f32 %v842, 1.0
        %v875 = vadd.f32 %v843, 1.0
        %v876 = vadd.f32 %v844, 1.0
        %v877 = vadd.f32 %v845, 1.0
        %v878 = vadd.f32 %v846, 1.0
        %v879 = vadd.f32 %v847, 1.0
        %v880 = vadd.f32 %v848, 1.0
        %v881 = vadd.f32 %v849, 1.0
        %v882 = vadd.f32 %v850, 1.0
        %v883 = vadd.f32 %v851, 1.0
        %v884 = vadd.f32 %v852, 1.0
        %v885 = vadd.f32 %v853, 1.0
        %v886 = vadd.f32 %v854, 1.0
        %v887 = vadd.f32 %v855, 1.0
        %v888 = vadd.f32 %v856, 1.0
        %v889 = vadd.f32 %v857, 1.0
        %v890 = vmul.f32 %v858, 0.5
        %v891 = vmul.f32 %v859, 0.5
        %v892 = vmul.f32 %v860, 0.5
        %v893 = vmul.f32 %v861, 0.5
        %v894 = vmul.f32 %v862, 0.5
        %v895 = vmul.f32 %v863, 0.5
        %v896 = vmul.f32 %v864, 0.5
        %v897 = vmul.f32 %v865, 0.5
        %v898 = vmul.f32 %v866, 0.5
        %v899 = vmul.f32 %v867, 0.5
        %v900 = vmul.f32 %v868, 0.5
        %v901 = vmul.f32 %v869, 0.5
        %v902 = vmul.f32 %v870, 0.5
        %v903 = vmul.f32 %v871, 0.5
        %v904 = vmul.f32 %v872, 0.5
        %v905 = vmul.f32 %v873, 0.5
        %v906 = vmul.f32 %v874, 0.5
        %v907 = vmul.f32 %v875, 0.5
        %v908 = vmul.f32 %v876, 0.5
        %v909 = vmul.f32 %v877, 0.5
        %v910 = vmul.f32 %v878, 0.5
        %v911 = vmul.f32 %v879, 0.5
        %v912 = vmul.f32 %v880, 0.5
        %v913 = vmul.f32 %v881, 0.5
        %v914 = vmul.f32 %v882, 0.5
        %v915 = vmul.f32 %v883, 0.5
        %v916 = vmul.f32 %v884, 0.5
        %v917 = vmul.f32 %v885, 0.5
        %v918 = vmul.f32 %v886, 0.5
        %v919 = vmul.f32 %v887, 0.5
        %v920 = vmul.f32 %v888, 0.5
        %v921 = vmul.f32 %v889, 0.5
        %v922 = vmul.f32 %v588, %v890
        %v923 = vmul.f32 %v590, %v891
        %v924 = vmul.f32 %v592, %v892
        %v925 = vmul.f32 %v594, %v893
        %v926 = vmul.f32 %v598, %v894
        %v927 = vmul.f32 %v600, %v895
        %v928 = vmul.f32 %v602, %v896
        %v929 = vmul.f32 %v604, %v897
        %v930 = vmul.f32 %v608, %v898
        %v931 = vmul.f32 %v610, %v899
        %v932 = vmul.f32 %v612, %v900
        %v933 = vmul.f32 %v614, %v901
        %v934 = vmul.f32 %v618, %v902
        %v935 = vmul.f32 %v620, %v903
        %v936 = vmul.f32 %v622, %v904
        %v937 = vmul.f32 %v624, %v905
        %v938 = vmul.f32 %v628, %v906
        %v939 = vmul.f32 %v630, %v907
        %v940 = vmul.f32 %v632, %v908
        %v941 = vmul.f32 %v634, %v909
        %v942 = vmul.f32 %v638, %v910
        %v943 = vmul.f32 %v640, %v911
        %v944 = vmul.f32 %v642, %v912
        %v945 = vmul.f32 %v644, %v913
        %v946 = vmul.f32 %v648, %v914
        %v947 = vmul.f32 %v650, %v915
        %v948 = vmul.f32 %v652, %v916
        %v949 = vmul.f32 %v654, %v917
        %v950 = vmul.f32 %v658, %v918
        %v951 = vmul.f32 %v660, %v919
        %v952 = vmul.f32 %v662, %v920
        %v953 = vmul.f32 %v664, %v921
        %v954 = vpack.c.bf16 %v924, %v922
        %v955 = vpack.c.bf16 %v925, %v923
        %v956 = vpack.c.bf16 %v928, %v926
        %v957 = vpack.c.bf16 %v929, %v927
        %v958 = vpack.c.bf16 %v932, %v930
        %v959 = vpack.c.bf16 %v933, %v931
        %v960 = vpack.c.bf16 %v936, %v934
        %v961 = vpack.c.bf16 %v937, %v935
        %v962 = vpack.c.bf16 %v940, %v938
        %v963 = vpack.c.bf16 %v941, %v939
        %v964 = vpack.c.bf16 %v944, %v942
        %v965 = vpack.c.bf16 %v945, %v943
        %v966 = vpack.c.bf16 %v948, %v946
        %v967 = vpack.c.bf16 %v949, %v947
        %v968 = vpack.c.bf16 %v952, %v950
        %v969 = vpack.c.bf16 %v953, %v951
        %v970 = vld [vmem:[%s319] sm:$0xf]
        %v971 = vld [vmem:[%s319 + $0x4] sm:$0xf]
        %v972 = vld [vmem:[%s319 + $0x8] sm:$0xf]
        %v973 = vld [vmem:[%s319 + $0xc] sm:$0xf]
        %v974 = vld [vmem:[%s319 + $0x10] sm:$0xf]
        %v975 = vld [vmem:[%s319 + $0x14] sm:$0xf]
        %v976 = vld [vmem:[%s319 + $0x18] sm:$0xf]
        %v977 = vld [vmem:[%s319 + $0x1c] sm:$0xf]
        %v978 = vld [vmem:[%s319 + $0x20] sm:$0xf]
        %v979 = vld [vmem:[%s319 + $0x24] sm:$0xf]
        %v980 = vld [vmem:[%s319 + $0x28] sm:$0xf]
        %v981 = vld [vmem:[%s319 + $0x2c] sm:$0xf]
        %v982 = vld [vmem:[%s319 + $0x30] sm:$0xf]
        %v983 = vld [vmem:[%s319 + $0x34] sm:$0xf]
        %v984 = vld [vmem:[%s319 + $0x38] sm:$0xf]
        %v985 = vld [vmem:[%s319 + $0x3c] sm:$0xf]
        %v986 = vld [vmem:[%s319 + $0x40] sm:$0xf]
        %v987 = vld [vmem:[%s319 + $0x44] sm:$0xf]
        %v988 = vld [vmem:[%s319 + $0x48] sm:$0xf]
        %v989 = vld [vmem:[%s319 + $0x4c] sm:$0xf]
        %v990 = vld [vmem:[%s319 + $0x50] sm:$0xf]
        %v991 = vld [vmem:[%s319 + $0x54] sm:$0xf]
        %v992 = vld [vmem:[%s319 + $0x58] sm:$0xf]
        %v993 = vld [vmem:[%s319 + $0x5c] sm:$0xf]
        %v994 = vld [vmem:[%s319 + $0x60] sm:$0xf]
        %v995 = vld [vmem:[%s319 + $0x64] sm:$0xf]
        %v996 = vld [vmem:[%s319 + $0x68] sm:$0xf]
        %v997 = vld [vmem:[%s319 + $0x6c] sm:$0xf]
        %v998 = vld [vmem:[%s319 + $0x70] sm:$0xf]
        %v999 = vld [vmem:[%s319 + $0x74] sm:$0xf]
        %v1000 = vld [vmem:[%s319 + $0x78] sm:$0xf]
        %v1001 = vld [vmem:[%s319 + $0x7c] sm:$0xf]
        %v1002 = vld [vmem:[%s377] sm:$0x1]
        %v1004 = vlaneseq
        %v1005 = vshrl.u32 %v1004, 7
        %v1006 = vsub.s32 0, %v1005
        %v1007 = vrot.slane %v1002, %v1006
        %v1041 = vunpack.c.l.b16 %v970
        %v1042 = vunpack.c.l.b16 %v971
        %v1043 = vunpack.c.l.b16 %v972
        %v1044 = vunpack.c.l.b16 %v973
        %v1045 = vunpack.c.l.b16 %v974
        %v1046 = vunpack.c.l.b16 %v975
        %v1047 = vunpack.c.l.b16 %v976
        %v1048 = vunpack.c.l.b16 %v977
        %v1049 = vunpack.c.l.b16 %v978
        %v1050 = vunpack.c.l.b16 %v979
        %v1051 = vunpack.c.l.b16 %v980
        %v1052 = vunpack.c.l.b16 %v981
        %v1053 = vunpack.c.l.b16 %v982
        %v1054 = vunpack.c.l.b16 %v983
        %v1055 = vunpack.c.l.b16 %v984
        %v1056 = vunpack.c.l.b16 %v985
        %v1057 = vunpack.c.l.b16 %v986
        %v1058 = vunpack.c.l.b16 %v987
        %v1059 = vunpack.c.l.b16 %v988
        %v1060 = vunpack.c.l.b16 %v989
        %v1061 = vunpack.c.l.b16 %v990
        %v1062 = vunpack.c.l.b16 %v991
        %v1063 = vunpack.c.l.b16 %v992
        %v1064 = vunpack.c.l.b16 %v993
        %v1065 = vunpack.c.l.b16 %v994
        %v1066 = vunpack.c.l.b16 %v995
        %v1067 = vunpack.c.l.b16 %v996
        %v1068 = vunpack.c.l.b16 %v997
        %v1069 = vunpack.c.l.b16 %v998
        %v1070 = vunpack.c.l.b16 %v999
        %v1071 = vunpack.c.l.b16 %v1000
        %v1072 = vunpack.c.l.b16 %v1001
        %v1073 = vpack.c.b16 %v1042, %v1041
        %v1074 = vpack.c.b16 %v1044, %v1043
        %v1075 = vpack.c.b16 %v1046, %v1045
        %v1076 = vpack.c.b16 %v1048, %v1047
        %v1077 = vpack.c.b16 %v1050, %v1049
        %v1078 = vpack.c.b16 %v1052, %v1051
        %v1079 = vpack.c.b16 %v1054, %v1053
        %v1080 = vpack.c.b16 %v1056, %v1055
        %v1081 = vpack.c.b16 %v1058, %v1057
        %v1082 = vpack.c.b16 %v1060, %v1059
        %v1083 = vpack.c.b16 %v1062, %v1061
        %v1084 = vpack.c.b16 %v1064, %v1063
        %v1085 = vpack.c.b16 %v1066, %v1065
        %v1086 = vpack.c.b16 %v1068, %v1067
        %v1087 = vpack.c.b16 %v1070, %v1069
        %v1088 = vpack.c.b16 %v1072, %v1071
        %1105 = vmatprep.subr.bf16.mxu0 0
        %1106 = vmatpush1.bf16.msra.mxu0 %v1073
        %1107 = vmatprep.subr.bf16.mxu0 0
        %1108 = vmatpush1.bf16.msra.mxu0 %v1074
        %1109 = vmatprep.subr.bf16.mxu0 0
        %1110 = vmatpush1.bf16.msra.mxu0 %v1075
        %1111 = vmatprep.subr.bf16.mxu0 0
        %1112 = vmatpush1.bf16.msra.mxu0 %v1076
        %1113 = vmatprep.subr.bf16.mxu0 0
        %1114 = vmatpush1.bf16.msra.mxu0 %v1077
        %1115 = vmatprep.subr.bf16.mxu0 0
        %1116 = vmatpush1.bf16.msra.mxu0 %v1078
        %1117 = vmatprep.subr.bf16.mxu0 0
        %1118 = vmatpush1.bf16.msra.mxu0 %v1079
        %1119 = vmatprep.subr.bf16.mxu0 0
        %1120 = vmatpush1.bf16.msra.mxu0 %v1080
        %1121 = vmatprep.subr.bf16.mxu0 0
        %1122 = vmatpush1.bf16.msra.mxu0 %v1081
        %1123 = vmatprep.subr.bf16.mxu0 0
        %1124 = vmatpush1.bf16.msra.mxu0 %v1082
        %1125 = vmatprep.subr.bf16.mxu0 0
        %1126 = vmatpush1.bf16.msra.mxu0 %v1083
        %1127 = vmatprep.subr.bf16.mxu0 0
        %1128 = vmatpush1.bf16.msra.mxu0 %v1084
        %1129 = vmatprep.subr.bf16.mxu0 0
        %1130 = vmatpush1.bf16.msra.mxu0 %v1085
        %1131 = vmatprep.subr.bf16.mxu0 0
        %1132 = vmatpush1.bf16.msra.mxu0 %v1086
        %1133 = vmatprep.subr.bf16.mxu0 0
        %1134 = vmatpush1.bf16.msra.mxu0 %v1087
        %1135 = vmatprep.subr.bf16.mxu0 0
        %1136 = vmatpush1.bf16.msra.mxu0 %v1088
        %1137 = vmatprep.mubr.bf16.mxu0 %v955
        %1138 = vmatmul.mubr.bf16.gmra.mrb[0].mxu0 %v954
        %v1139 = vpop.f32.mrb[0].mxu0
        %v1140 = vadd.f32 %v1007, %v1139
        %v1141 = vpop.f32.mrb[0].mxu0
        %v1142 = vpop.f32.mrb[0].mxu0
        %v1143 = vadd.f32 %v1007, %v1142
        %v1144 = vpop.f32.mrb[0].mxu0
        %1145 = vmatprep.mubr.bf16.mxu0 %v957
        %1146 = vmatmul.mubr.bf16.gmra.mrb[0].mxu0 %v956
        %v1147 = vpop.f32.mrb[0].mxu0
        %v1148 = vadd.f32 %v1007, %v1147
        %v1149 = vpop.f32.mrb[0].mxu0
        %v1150 = vpop.f32.mrb[0].mxu0
        %v1151 = vadd.f32 %v1007, %v1150
        %v1152 = vpop.f32.mrb[0].mxu0
        %1153 = vmatprep.mubr.bf16.mxu0 %v959
        %1154 = vmatmul.mubr.bf16.gmra.mrb[0].mxu0 %v958
        %v1155 = vpop.f32.mrb[0].mxu0
        %v1156 = vadd.f32 %v1007, %v1155
        %v1157 = vpop.f32.mrb[0].mxu0
        %v1158 = vpop.f32.mrb[0].mxu0
        %v1159 = vadd.f32 %v1007, %v1158
        %v1160 = vpop.f32.mrb[0].mxu0
        %1161 = vmatprep.mubr.bf16.mxu0 %v961
        %1162 = vmatmul.mubr.bf16.gmra.mrb[0].mxu0 %v960
        %v1163 = vpop.f32.mrb[0].mxu0
        %v1164 = vadd.f32 %v1007, %v1163
        %v1165 = vpop.f32.mrb[0].mxu0
        %v1166 = vpop.f32.mrb[0].mxu0
        %v1167 = vadd.f32 %v1007, %v1166
        %v1168 = vpop.f32.mrb[0].mxu0
        %1169 = vmatprep.mubr.bf16.mxu0 %v963
        %1170 = vmatmul.mubr.bf16.gmra.mrb[0].mxu0 %v962
        %v1171 = vpop.f32.mrb[0].mxu0
        %v1172 = vadd.f32 %v1007, %v1171
        %v1173 = vpop.f32.mrb[0].mxu0
        %v1174 = vpop.f32.mrb[0].mxu0
        %v1175 = vadd.f32 %v1007, %v1174
        %v1176 = vpop.f32.mrb[0].mxu0
        %1177 = vmatprep.mubr.bf16.mxu0 %v965
        %1178 = vmatmul.mubr.bf16.gmra.mrb[0].mxu0 %v964
        %v1179 = vpop.f32.mrb[0].mxu0
        %v1180 = vadd.f32 %v1007, %v1179
        %v1181 = vpop.f32.mrb[0].mxu0
        %v1182 = vpop.f32.mrb[0].mxu0
        %v1183 = vadd.f32 %v1007, %v1182
        %v1184 = vpop.f32.mrb[0].mxu0
        %1185 = vmatprep.mubr.bf16.mxu0 %v967
        %1186 = vmatmul.mubr.bf16.gmra.mrb[0].mxu0 %v966
        %v1187 = vpop.f32.mrb[0].mxu0
        %v1188 = vadd.f32 %v1007, %v1187
        %v1189 = vpop.f32.mrb[0].mxu0
        %v1190 = vpop.f32.mrb[0].mxu0
        %v1191 = vadd.f32 %v1007, %v1190
        %v1192 = vpop.f32.mrb[0].mxu0
        %1193 = vmatprep.mubr.bf16.mxu0 %v969
        %1194 = vmatmul.mubr.bf16.gmra.mrb[0].mxu0 %v968
        %v1195 = vpop.f32.mrb[0].mxu0
        %v1196 = vadd.f32 %v1007, %v1195
        %v1197 = vpop.f32.mrb[0].mxu0
        %v1198 = vpop.f32.mrb[0].mxu0
        %v1199 = vadd.f32 %v1007, %v1198
        %v1200 = vpop.f32.mrb[0].mxu0
        %1201 = vdwg.mxu0
        %1202 = vst [vmem:[%s364] sm:$0xff] %v1140
        %1203 = vst [vmem:[%s364 + $0x8] sm:$0xff] %v1143
        %1204 = vst [vmem:[%s364 + $0x10] sm:$0xff] %v1148
        %1205 = vst [vmem:[%s364 + $0x18] sm:$0xff] %v1151
        %1206 = vst [vmem:[%s364 + $0x20] sm:$0xff] %v1156
        %1207 = vst [vmem:[%s364 + $0x28] sm:$0xff] %v1159
        %1208 = vst [vmem:[%s364 + $0x30] sm:$0xff] %v1164
        %1209 = vst [vmem:[%s364 + $0x38] sm:$0xff] %v1167
        %1210 = vst [vmem:[%s364 + $0x40] sm:$0xff] %v1172
        %1211 = vst [vmem:[%s364 + $0x48] sm:$0xff] %v1175
        %1212 = vst [vmem:[%s364 + $0x50] sm:$0xff] %v1180
        %1213 = vst [vmem:[%s364 + $0x58] sm:$0xff] %v1183
        %1214 = vst [vmem:[%s364 + $0x60] sm:$0xff] %v1188
        %1215 = vst [vmem:[%s364 + $0x68] sm:$0xff] %v1191
        %1216 = vst [vmem:[%s364 + $0x70] sm:$0xff] %v1196
        %1217 = vst [vmem:[%s364 + $0x78] sm:$0xff] %v1199
        %s1218 = sand.u32 %s176, 1
        %s1219 = scalar_lea.sflag [#allocation6], %s1218
        %s1220 = sand.u32 %s176, 1
        %s1221 = smul.addr %s1220, 128
        %s1222 = scalar_lea.vmem [#allocation10], %s1221
        // Predicated region
        $region53: #{tpu_custom_call.1} parent=39 // pred_check
          %p1223 = pneg %p186
        $region54: #{tpu_custom_call.1} parent=39 // pred_check_branch
          %1225 = sbr.rel (%p1223) target = $region56
        $region55: #{tpu_custom_call.1} parent=39 // pred_region
          %s1226 = smul.u32 16, %s30
          %s1228 = ssub.s32 2048, 2048
          %1229 = vsyncadd %s1219, %s1228
          %s1230 = smul.addr %s1226, 128
          %s1231 = scalar_lea.hbm %s6, %s1230
          %s1232 = sshll.u32 %s1222, 4
          %s1233 = int_to_ptr.vmem [resolvable:$true] %s1232
          %1238 = dma.vmem_to_hbm [thread:$0]  %s1233, 2048, %s1231, %s1219, 128, 128, 8
        $region56: #{tpu_custom_call.1} parent=39 // pred_fallthru
          _
      $region40: #{tpu_custom_call.1} parent=5 // pred_fallthru
        _
      %p1239 = scmp.le.s32.totalorder 2, %s25
      // Predicated region
      $region57: #{tpu_custom_call.1} parent=5 // pred_check
        %p1240 = pneg %p1239
      $region58: #{tpu_custom_call.1} parent=5 // pred_check_branch
        %1242 = sbr.rel (%p1240) target = $region60
      $region59: #{tpu_custom_call.1} parent=5 // pred_region
        %s1243 = ssub.s32 %s25, 2
        // Predicated region
        $region61: #{tpu_custom_call.1} parent=59 // pred_check
          %p1244 = pneg %p192
        $region62: #{tpu_custom_call.1} parent=59 // pred_check_branch
          %1246 = sbr.rel (%p1244) target = $region64
        $region63: #{tpu_custom_call.1} parent=59 // pred_region
          %s1247 = sand.u32 %s177, 1
          %s1248 = scalar_lea.sflag [#allocation6], %s1247
          %s1249 = sand.u32 %s177, 1
          %s1250 = smul.addr %s1249, 128
          %s1251 = scalar_lea.vmem [#allocation10], %s1250
          %1252 = dma.done %s1248, 2048
        $region64: #{tpu_custom_call.1} parent=59 // pred_fallthru
          _
      $region60: #{tpu_custom_call.1} parent=5 // pred_fallthru
        _
    $region6: #{tpu_custom_call.1} parent=1 // loop_footer
      %s29 = sadd.s32 1, %s25
    $region7: #{tpu_custom_call.1} parent=1 // loop_footer_branch
      %24 = sbr.rel target = $region3
    $region8: #{tpu_custom_call.1} parent=1 // loop_exit
      _
    %1253 = vsyncpa [#allocation5], 1
    %s1254 = scalar_lea.sflag [#allocation5], 1
    %1255 = vsyncpa %s1254, 1
    %1256 = vsyncpa [#allocation8], 1
    %s1257 = scalar_lea.sflag [#allocation8], 1
    %1258 = vsyncpa %s1257, 1
    %1259 = vsyncpa [#allocation6], 1
    %s1260 = scalar_lea.sflag [#allocation6], 1
    %1261 = vsyncpa %s1260, 1

</llo_original>
